<compile_context>
chip_gen: v5e
topology: v5e:2x2
jax: 0.10.0
libtpu: 0.0.40
codegen_flags: <defaults>
</compile_context>

<pallas_src>
import functools

import jax
import jax.numpy as jnp
from jax.experimental import pallas as pl
from jax.experimental.pallas import tpu as pltpu


def _round_up(x: int, m: int) -> int:
    return ((x + m - 1) // m) * m


def _vmem_capacity_bytes() -> int:
    try:
        info = pltpu.get_tpu_info()
        cap = getattr(info, "vmem_capacity_bytes", None)
        if cap:
            return int(cap)
    except Exception:
        pass
    return 64 * 1024 * 1024  # conservative: v7x per-TensorCore VMEM


# ---------------------------------------------------------------------------
# Kernel: one batch tile through all three layers, weights resident in VMEM.
# ---------------------------------------------------------------------------
def mlp_kernel(x_ref, w0_ref, b0_ref, w1_ref, b1_ref, wc_ref, bc_ref, o_ref,
               *, num_classes):
    # In-kernel cast of the f32 input tile to bf16 (no wrapper-side cast pass).
    x = x_ref[...].astype(w0_ref.dtype)
    # fc0: Linear + ReLU (Dropout is identity in eval mode).
    h = jnp.dot(x, w0_ref[...], preferred_element_type=jnp.float32)
    h = jnp.maximum(h + b0_ref[...], 0.0)
    # fc1: Linear + ReLU.  bf16 MXU operands, f32 accumulation; bias/ReLU on VPU.
    h = jnp.dot(h.astype(w1_ref.dtype), w1_ref[...],
                preferred_element_type=jnp.float32)
    h = jnp.maximum(h + b1_ref[...], 0.0)
    # classifier: lane-dense (128-padded) matmul, narrow unpadded store.
    y = jnp.dot(h.astype(wc_ref.dtype), wc_ref[...],
                preferred_element_type=jnp.float32)
    y = y + bc_ref[...]
    o_ref[...] = y[:, :num_classes].astype(o_ref.dtype)


# ---------------------------------------------------------------------------
# One-time parameter preprocessing (hoisted out of the per-call path).
# ---------------------------------------------------------------------------
def prepare_params(params, *, compute_dtype=jnp.bfloat16):
    """Transpose PyTorch-convention (out, in) weights to (in, out), cast matmul
    operands to bf16, reshape biases to (1, out) f32, and zero-pad only the
    classifier *weights/bias* to a 128-lane multiple (MXU stays lane-dense;
    the kernel's output store is unpadded)."""
    w0 = params["w0"].T.astype(compute_dtype)        # (D, H)
    w1 = params["w1"].T.astype(compute_dtype)        # (H, H)
    wc = params["wc"].T.astype(compute_dtype)        # (H, C)
    b0 = params["b0"][None, :].astype(jnp.float32)   # (1, H)
    b1 = params["b1"][None, :].astype(jnp.float32)   # (1, H)
    bc = params["bc"][None, :].astype(jnp.float32)   # (1, C)

    num_classes = wc.shape[1]
    c_pad = max(128, _round_up(num_classes, 128))
    if c_pad != num_classes:
        wc = jnp.pad(wc, ((0, 0), (0, c_pad - num_classes)))
        bc = jnp.pad(bc, ((0, 0), (0, c_pad - num_classes)))

    return dict(w0=w0, b0=b0, w1=w1, b1=b1, wc=wc, bc=bc,
                num_classes=num_classes)


def _auto_tb(batch: int) -> int:
    # Whole batch in one VMEM tile when small; otherwise split so the grid has
    # at least 2 steps (v7x megacore) and cap at 512 rows (HBM-roofline sweet
    # spot; amortizes the ~0.35 us per-grid-step overhead).
    if batch <= 128:
        return _round_up(batch, 16)
    half = _round_up((batch + 1) // 2, 16)
    return min(512, half)


def _xla_forward(x, prep):
    """Plain XLA fallback (same bf16/f32 recipe) for weights that exceed VMEM."""
    dt = prep["w0"].dtype
    h = jnp.dot(x.astype(dt), prep["w0"], preferred_element_type=jnp.float32)
    h = jnp.maximum(h + prep["b0"], 0.0)
    h = jnp.dot(h.astype(dt), prep["w1"], preferred_element_type=jnp.float32)
    h = jnp.maximum(h + prep["b1"], 0.0)
    y = jnp.dot(h.astype(dt), prep["wc"], preferred_element_type=jnp.float32)
    return (y + prep["bc"])[:, :prep["num_classes"]]


def simple_mlp_forward(x, prep, *, tb=None):
    """x: (B, input_size) float32. prep: output of prepare_params()."""
    B, D = x.shape
    w0, b0, w1, b1, wc, bc = (prep["w0"], prep["b0"], prep["w1"],
                              prep["b1"], prep["wc"], prep["bc"])
    H = w0.shape[1]
    Cp = wc.shape[1]
    C = prep["num_classes"]
    assert w0.shape[0] == D

    if tb is None:
        tb = _auto_tb(B)
    tb = _round_up(min(tb, _round_up(B, 16)), 16)
    Bp = _round_up(B, tb)

    w_itemsize = jnp.dtype(w0.dtype).itemsize
    weight_bytes = (D * H + H * H + H * Cp) * w_itemsize       # resident, 1-buf
    bias_bytes = (2 * H + Cp) * 4                              # resident, 1-buf
    x_tile_bytes = tb * D * 4                                  # f32 input tile
    out_tile_bytes = tb * C * 4                                # unpadded output
    interm_bytes = tb * (2 * D + 8 * H + 4 * Cp)               # in-kernel temps
    vmem_need = (weight_bytes + bias_bytes
                 + 2 * (x_tile_bytes + out_tile_bytes)         # double-buffered I/O
                 + interm_bytes)

    vmem_cap = _vmem_capacity_bytes()
    if vmem_need > int(0.85 * vmem_cap):
        # Resident-weight design does not fit this generation's VMEM.
        return _xla_forward(x, prep)

    if Bp != B:
        x = jnp.pad(x, ((0, Bp - B), (0, 0)))   # only when B isn't a tile multiple

    vmem_limit = min(vmem_cap, max(32 * 1024 * 1024, (3 * vmem_need) // 2))

    flops = int(2 * Bp * (D * H + H * H + H * Cp))
    bytes_accessed = int(Bp * D * 4 + weight_bytes + bias_bytes + Bp * C * 4)

    # Grid-invariant operands: single-buffered so resident VMEM isn't charged
    # twice (matters on v7x's 64 MiB VMEM); they are only fetched once anyway.
    def resident(shape):
        return pl.BlockSpec(shape, lambda i: (0, 0),
                            pipeline_mode=pl.Buffered(1))

    out = pl.pallas_call(
        functools.partial(mlp_kernel, num_classes=C),
        out_shape=jax.ShapeDtypeStruct((Bp, C), jnp.float32),
        grid_spec=pltpu.PrefetchScalarGridSpec(
            num_scalar_prefetch=0,
            grid=(Bp // tb,),
            in_specs=[
                pl.BlockSpec((tb, D), lambda i: (i, 0)),   # x tile over batch
                resident((D, H)),                          # W0 (resident)
                resident((1, H)),                          # b0 (resident)
                resident((H, H)),                          # W1 (resident)
                resident((1, H)),                          # b1 (resident)
                resident((H, Cp)),                         # Wc (resident, padded)
                resident((1, Cp)),                         # bc (resident, padded)
            ],
            out_specs=pl.BlockSpec((tb, C), lambda i: (i, 0)),
        ),
        compiler_params=pltpu.CompilerParams(
            dimension_semantics=("parallel",),
            vmem_limit_bytes=int(vmem_limit),
        ),
        cost_estimate=pl.CostEstimate(
            flops=flops, transcendentals=0, bytes_accessed=bytes_accessed),
    )(x, w0, b0, w1, b1, wc, bc)

    return out if Bp == B else out[:B]


# ---------------------------------------------------------------------------
# Init + reference (mirrors the kernel's bf16-in / f32-accumulate recipe).
# ---------------------------------------------------------------------------
def init_params(key, input_size, hidden_size, num_classes):
    """Deterministic init mimicking nn.Linear default (uniform +-1/sqrt(fan_in))."""
    ks = jax.random.split(key, 6)

    def lin(kw, kb, fan_in, fan_out):
        bound = 1.0 / jnp.sqrt(fan_in)
        w = jax.random.uniform(kw, (fan_out, fan_in), jnp.float32, -bound, bound)
        b = jax.random.uniform(kb, (fan_out,), jnp.float32, -bound, bound)
        return w, b

    w0, b0 = lin(ks[0], ks[1], input_size, hidden_size)
    w1, b1 = lin(ks[2], ks[3], hidden_size, hidden_size)
    wc, bc = lin(ks[4], ks[5], hidden_size, num_classes)
    return dict(w0=w0, b0=b0, w1=w1, b1=b1, wc=wc, bc=bc)


def reference_forward(x, prep):
    return _xla_forward(x, prep)


if __name__ == "__main__":
    # Small shapes consistent with the module (hidden_layers=2, num_classes=2).
    input_size = 256
    hidden_size = 128
    num_classes = 2

    key = jax.random.PRNGKey(0)
    kx, kx2, kp = jax.random.split(key, 3)
    params = init_params(kp, input_size, hidden_size, num_classes)
    prep = prepare_params(params)          # one-time: transpose / cast / pad

    # Case 1: small batch, single tile, single grid step.
    batch = 32
    x = jax.random.normal(kx, (batch, input_size), dtype=jnp.float32)
    out = jax.block_until_ready(simple_mlp_forward(x, prep))
    ref = reference_forward(x, prep)
    assert out.shape == (batch, num_classes)
    assert jnp.allclose(out, ref, atol=1e-2, rtol=1e-2), (
        float(jnp.max(jnp.abs(out - ref))))

    # Case 2: ragged batch -> multi-step grid + in-wrapper pad + row slice-back.
    batch2 = 272
    x2 = jax.random.normal(kx2, (batch2, input_size), dtype=jnp.float32)
    out2 = jax.block_until_ready(simple_mlp_forward(x2, prep))
    ref2 = reference_forward(x2, prep)
    assert out2.shape == (batch2, num_classes)
    assert jnp.allclose(out2, ref2, atol=1e-2, rtol=1e-2), (
        float(jnp.max(jnp.abs(out2 - ref2))))

    print("KERNEL_OK")
</pallas_src>

<mosaic_0001>
module attributes {stable_mosaic.version = 11 : i64} {
  func.func @mlp_kernel(%arg0: i32, %arg1: memref<32x256xf32, #tpu.memory_space<vmem>>, %arg2: memref<256x128xbf16, #tpu.memory_space<vmem>>, %arg3: memref<1x128xf32, #tpu.memory_space<vmem>>, %arg4: memref<128x128xbf16, #tpu.memory_space<vmem>>, %arg5: memref<1x128xf32, #tpu.memory_space<vmem>>, %arg6: memref<128x128xbf16, #tpu.memory_space<vmem>>, %arg7: memref<1x128xf32, #tpu.memory_space<vmem>>, %arg8: memref<32x2xf32, #tpu.memory_space<vmem>>) attributes {dimension_semantics = [#tpu.dimension_semantics<parallel>], iteration_bounds = array<i64: 1>, scalar_prefetch = 0 : i64, scratch_operands = 0 : i64, tpu.core_type = #tpu.core_type<tc>, window_params = [{transform_indices = @transform_0, window_bounds = array<i64: 32, 256>}, {pipeline_mode = #tpu.pipeline_mode<synchronous>, transform_indices = @transform_1, window_bounds = array<i64: 256, 128>}, {pipeline_mode = #tpu.pipeline_mode<synchronous>, transform_indices = @transform_2, window_bounds = array<i64: 1, 128>}, {pipeline_mode = #tpu.pipeline_mode<synchronous>, transform_indices = @transform_3, window_bounds = array<i64: 128, 128>}, {pipeline_mode = #tpu.pipeline_mode<synchronous>, transform_indices = @transform_4, window_bounds = array<i64: 1, 128>}, {pipeline_mode = #tpu.pipeline_mode<synchronous>, transform_indices = @transform_5, window_bounds = array<i64: 128, 128>}, {pipeline_mode = #tpu.pipeline_mode<synchronous>, transform_indices = @transform_6, window_bounds = array<i64: 1, 128>}, {transform_indices = @transform_7, window_bounds = array<i64: 32, 2>}]} {
    %c0 = arith.constant 0 : index
    %c0_0 = arith.constant 0 : index
    %0 = vector.load %arg1[%c0, %c0_0] : memref<32x256xf32, #tpu.memory_space<vmem>>, vector<32x256xf32>
    %1 = arith.truncf %0 : vector<32x256xf32> to vector<32x256xbf16>
    %c0_1 = arith.constant 0 : index
    %c0_2 = arith.constant 0 : index
    %2 = vector.load %arg2[%c0_1, %c0_2] : memref<256x128xbf16, #tpu.memory_space<vmem>>, vector<256x128xbf16>
    %cst = arith.constant dense<0.000000e+00> : vector<32x128xf32>
    %3 = tpu.matmul %1, %2, %cst {dimension_numbers = #tpu.dot_dimension_numbers<[1], [0], [0], [1], [0, 0, 1, 1], [], []>} : vector<32x256xbf16>, vector<256x128xbf16>, vector<32x128xf32> -> vector<32x128xf32>
    %c0_3 = arith.constant 0 : index
    %c0_4 = arith.constant 0 : index
    %4 = vector.load %arg3[%c0_3, %c0_4] : memref<1x128xf32, #tpu.memory_space<vmem>>, vector<1x128xf32>
    %5 = vector.broadcast %4 : vector<1x128xf32> to vector<32x128xf32>
    %6 = arith.addf %3, %5 : vector<32x128xf32>
    %cst_5 = arith.constant 0.000000e+00 : f32
    %7 = vector.broadcast %cst_5 : f32 to vector<32x128xf32>
    %8 = arith.maximumf %6, %7 : vector<32x128xf32>
    %9 = arith.truncf %8 : vector<32x128xf32> to vector<32x128xbf16>
    %c0_6 = arith.constant 0 : index
    %c0_7 = arith.constant 0 : index
    %10 = vector.load %arg4[%c0_6, %c0_7] : memref<128x128xbf16, #tpu.memory_space<vmem>>, vector<128x128xbf16>
    %cst_8 = arith.constant dense<0.000000e+00> : vector<32x128xf32>
    %11 = tpu.matmul %9, %10, %cst_8 {dimension_numbers = #tpu.dot_dimension_numbers<[1], [0], [0], [1], [0, 0, 1, 1], [], []>} : vector<32x128xbf16>, vector<128x128xbf16>, vector<32x128xf32> -> vector<32x128xf32>
    %c0_9 = arith.constant 0 : index
    %c0_10 = arith.constant 0 : index
    %12 = vector.load %arg5[%c0_9, %c0_10] : memref<1x128xf32, #tpu.memory_space<vmem>>, vector<1x128xf32>
    %13 = vector.broadcast %12 : vector<1x128xf32> to vector<32x128xf32>
    %14 = arith.addf %11, %13 : vector<32x128xf32>
    %cst_11 = arith.constant 0.000000e+00 : f32
    %15 = vector.broadcast %cst_11 : f32 to vector<32x128xf32>
    %16 = arith.maximumf %14, %15 : vector<32x128xf32>
    %17 = arith.truncf %16 : vector<32x128xf32> to vector<32x128xbf16>
    %c0_12 = arith.constant 0 : index
    %c0_13 = arith.constant 0 : index
    %18 = vector.load %arg6[%c0_12, %c0_13] : memref<128x128xbf16, #tpu.memory_space<vmem>>, vector<128x128xbf16>
    %cst_14 = arith.constant dense<0.000000e+00> : vector<32x128xf32>
    %19 = tpu.matmul %17, %18, %cst_14 {dimension_numbers = #tpu.dot_dimension_numbers<[1], [0], [0], [1], [0, 0, 1, 1], [], []>} : vector<32x128xbf16>, vector<128x128xbf16>, vector<32x128xf32> -> vector<32x128xf32>
    %c0_15 = arith.constant 0 : index
    %c0_16 = arith.constant 0 : index
    %20 = vector.load %arg7[%c0_15, %c0_16] : memref<1x128xf32, #tpu.memory_space<vmem>>, vector<1x128xf32>
    %21 = vector.broadcast %20 : vector<1x128xf32> to vector<32x128xf32>
    %22 = arith.addf %19, %21 : vector<32x128xf32>
    %23 = vector.extract_strided_slice %22 {offsets = [0, 0], sizes = [32, 2], strides = [1, 1]} : vector<32x128xf32> to vector<32x2xf32>
    %c0_17 = arith.constant 0 : index
    %c0_18 = arith.constant 0 : index
    %24 = vector.load %arg8[%c0_17, %c0_18] : memref<32x2xf32, #tpu.memory_space<vmem>>, vector<32x2xf32>
    tpu.vector_store %arg8[%c0_17, %c0_18], %23 {strides = array<i32>} : memref<32x2xf32, #tpu.memory_space<vmem>>, vector<32x2xf32>,
    return
  }
  func.func @transform_0(%arg0: i32) -> (i32, i32) {
    %c0_i32 = arith.constant 0 : i32
    %c0_i32_0 = arith.constant 0 : i32
    return %arg0, %c0_i32 : i32, i32
  }
  func.func @transform_1(%arg0: i32) -> (i32, i32) {
    %c0_i32 = arith.constant 0 : i32
    %c0_i32_0 = arith.constant 0 : i32
    %c0_i32_1 = arith.constant 0 : i32
    return %c0_i32, %c0_i32_0 : i32, i32
  }
  func.func @transform_2(%arg0: i32) -> (i32, i32) {
    %c0_i32 = arith.constant 0 : i32
    %c0_i32_0 = arith.constant 0 : i32
    %c0_i32_1 = arith.constant 0 : i32
    return %c0_i32, %c0_i32_0 : i32, i32
  }
  func.func @transform_3(%arg0: i32) -> (i32, i32) {
    %c0_i32 = arith.constant 0 : i32
    %c0_i32_0 = arith.constant 0 : i32
    %c0_i32_1 = arith.constant 0 : i32
    return %c0_i32, %c0_i32_0 : i32, i32
  }
  func.func @transform_4(%arg0: i32) -> (i32, i32) {
    %c0_i32 = arith.constant 0 : i32
    %c0_i32_0 = arith.constant 0 : i32
    %c0_i32_1 = arith.constant 0 : i32
    return %c0_i32, %c0_i32_0 : i32, i32
  }
  func.func @transform_5(%arg0: i32) -> (i32, i32) {
    %c0_i32 = arith.constant 0 : i32
    %c0_i32_0 = arith.constant 0 : i32
    %c0_i32_1 = arith.constant 0 : i32
    return %c0_i32, %c0_i32_0 : i32, i32
  }
  func.func @transform_6(%arg0: i32) -> (i32, i32) {
    %c0_i32 = arith.constant 0 : i32
    %c0_i32_0 = arith.constant 0 : i32
    %c0_i32_1 = arith.constant 0 : i32
    return %c0_i32, %c0_i32_0 : i32, i32
  }
  func.func @transform_7(%arg0: i32) -> (i32, i32) {
    %c0_i32 = arith.constant 0 : i32
    %c0_i32_0 = arith.constant 0 : i32
    return %arg0, %c0_i32 : i32, i32
  }
}

</mosaic_0001>

<llo_original>
// kernel: tpu_custom_call.1
$region0: #{tpu_custom_call.1}
  #allocation0 [shape = 'u32[]', space=smem, size = 0x4, offset = 0x4, fixed_abs, tag = 'smem constant byte address 0x4 - core index']
  #allocation1 [shape = 'u32[72,128]{1,0:T(1,128)}', space=vmem, size = 0x9000, scoped, tag = 'internal scratch']
  %s0 = inlined_call_operand.hbm [shape: f32[32,256], index: 0, kind: input, shape index: {}]
  %s1 = inlined_call_operand.hbm [shape: bf16[256,128], index: 1, kind: input, shape index: {}]
  %s2 = inlined_call_operand.vmem [shape: f32[1,128], index: 2, kind: input, shape index: {}]
  %s3 = inlined_call_operand.hbm [shape: bf16[128,128], index: 3, kind: input, shape index: {}]
  %s4 = inlined_call_operand.vmem [shape: f32[1,128], index: 4, kind: input, shape index: {}]
  %s5 = inlined_call_operand.hbm [shape: bf16[128,128], index: 5, kind: input, shape index: {}]
  %s6 = inlined_call_operand.vmem [shape: f32[1,128], index: 6, kind: input, shape index: {}]
  %s7 = inlined_call_operand.vmem [shape: f32[32,2], index: 7, kind: output, shape index: {}]
  %s8 = sld [smem:[#allocation0]]
  $region54: #{tpu_custom_call.1} parent=0
    _
  %s10 = ssub.s32 1, %s8
  %s11 = scalar_select 0, %s10, %s8
  $region1: #{tpu_custom_call.1} parent=0
    #allocation2 [shape = 'u8[32768]{0}', space=vmem, size = 0x8000, scoped, tag = 'input window, operand 0, single buffered']
    #allocation3 [shape = 's32[1]{0}', space=sflag, size = 0x4, scoped, tag = 'scoped memory for tpu_custom_call.1']
    #allocation4 [shape = 'u8[65536]{0}', space=vmem, size = 0x10000, scoped, tag = 'input window, operand 1, single buffered']
    #allocation5 [shape = 's32[1]{0}', space=sflag, size = 0x4, scoped, tag = 'scoped memory for tpu_custom_call.1']
    #allocation6 [shape = 'u8[32768]{0}', space=vmem, size = 0x8000, scoped, tag = 'input window, operand 3, single buffered']
    #allocation7 [shape = 'u8[32768]{0}', space=vmem, size = 0x8000, scoped, tag = 'input window, operand 5, single buffered']
    #allocation8 [shape = 's32[1]{0}', space=sflag, size = 0x4, scoped, tag = 'scoped memory for tpu_custom_call.1']
    %12 = vsyncpa [#allocation3], 0
    %13 = vsyncpa [#allocation5], 0
    %14 = vsyncpa [#allocation8], 0
    // Predicated region
    $region2: #{tpu_custom_call.1} parent=1 // pred_check
      _
    $region3: #{tpu_custom_call.1} parent=1 // pred_check_branch
      %16 = sbr.rel (0) target = $region5
    $region4: #{tpu_custom_call.1} parent=1 // pred_region
      %18 = vsyncadd [#allocation3], 0
      %s19 = sshll.u32 %s0, 4
      %s20 = int_to_ptr.hbm [resolvable:$true] %s19
      %s21 = sshll.u32 [#allocation2], 4
      %s22 = int_to_ptr.vmem [resolvable:$true] %s21
      %27 = dma.hbm_to_vmem [thread:$0]  %s20, 1024, %s22, [#allocation3], 256, 256, 16
    $region5: #{tpu_custom_call.1} parent=1 // pred_fallthru
      _
    // Predicated region
    $region6: #{tpu_custom_call.1} parent=1 // pred_check
      _
    $region7: #{tpu_custom_call.1} parent=1 // pred_check_branch
      %29 = sbr.rel (0) target = $region9
    $region8: #{tpu_custom_call.1} parent=1 // pred_region
      %31 = vsyncadd [#allocation5], 0
      %s32 = sshll.u32 %s1, 4
      %s33 = int_to_ptr.hbm [resolvable:$true] %s32
      %s34 = sshll.u32 [#allocation4], 4
      %s35 = int_to_ptr.vmem [resolvable:$true] %s34
      %40 = dma.hbm_to_vmem [thread:$0]  %s33, 2048, %s35, [#allocation5], 64, 64, 4
    $region9: #{tpu_custom_call.1} parent=1 // pred_fallthru
      _
    // Predicated region
    $region10: #{tpu_custom_call.1} parent=1 // pred_check
      _
    $region11: #{tpu_custom_call.1} parent=1 // pred_check_branch
      %42 = sbr.rel (0) target = $region13
    $region12: #{tpu_custom_call.1} parent=1 // pred_region
      _
    $region13: #{tpu_custom_call.1} parent=1 // pred_fallthru
      _
    // Predicated region
    $region14: #{tpu_custom_call.1} parent=1 // pred_check
      _
    $region15: #{tpu_custom_call.1} parent=1 // pred_check_branch
      %44 = sbr.rel (0) target = $region17
    $region16: #{tpu_custom_call.1} parent=1 // pred_region
      %46 = vsyncadd [#allocation5], 0
      %s47 = sshll.u32 %s3, 4
      %s48 = int_to_ptr.hbm [resolvable:$true] %s47
      %s49 = sshll.u32 [#allocation6], 4
      %s50 = int_to_ptr.vmem [resolvable:$true] %s49
      %55 = dma.hbm_to_vmem [thread:$0]  %s48, 1024, %s50, [#allocation5], 64, 64, 4
    $region17: #{tpu_custom_call.1} parent=1 // pred_fallthru
      _
    // Predicated region
    $region18: #{tpu_custom_call.1} parent=1 // pred_check
      _
    $region19: #{tpu_custom_call.1} parent=1 // pred_check_branch
      %57 = sbr.rel (0) target = $region21
    $region20: #{tpu_custom_call.1} parent=1 // pred_region
      _
    $region21: #{tpu_custom_call.1} parent=1 // pred_fallthru
      _
    // Predicated region
    $region22: #{tpu_custom_call.1} parent=1 // pred_check
      _
    $region23: #{tpu_custom_call.1} parent=1 // pred_check_branch
      %59 = sbr.rel (0) target = $region25
    $region24: #{tpu_custom_call.1} parent=1 // pred_region
      %61 = vsyncadd [#allocation8], 0
      %s62 = sshll.u32 %s5, 4
      %s63 = int_to_ptr.hbm [resolvable:$true] %s62
      %s64 = sshll.u32 [#allocation7], 4
      %s65 = int_to_ptr.vmem [resolvable:$true] %s64
      %70 = dma.hbm_to_vmem [thread:$0]  %s63, 1024, %s65, [#allocation8], 64, 64, 4
    $region25: #{tpu_custom_call.1} parent=1 // pred_fallthru
      _
    // Predicated region
    $region26: #{tpu_custom_call.1} parent=1 // pred_check
      _
    $region27: #{tpu_custom_call.1} parent=1 // pred_check_branch
      %72 = sbr.rel (0) target = $region29
    $region28: #{tpu_custom_call.1} parent=1 // pred_region
      _
    $region29: #{tpu_custom_call.1} parent=1 // pred_fallthru
      _
    // Predicated region
    $region30: #{tpu_custom_call.1} parent=1 // pred_check
      _
    $region31: #{tpu_custom_call.1} parent=1 // pred_check_branch
      %74 = sbr.rel (0) target = $region33
    $region32: #{tpu_custom_call.1} parent=1 // pred_region
      %76 = dma.done [#allocation3], 1024
    $region33: #{tpu_custom_call.1} parent=1 // pred_fallthru
      _
    // Predicated region
    $region34: #{tpu_custom_call.1} parent=1 // pred_check
      _
    $region35: #{tpu_custom_call.1} parent=1 // pred_check_branch
      %78 = sbr.rel (0) target = $region37
    $region36: #{tpu_custom_call.1} parent=1 // pred_region
      %80 = dma.done [#allocation5], 2048
    $region37: #{tpu_custom_call.1} parent=1 // pred_fallthru
      _
    // Predicated region
    $region38: #{tpu_custom_call.1} parent=1 // pred_check
      _
    $region39: #{tpu_custom_call.1} parent=1 // pred_check_branch
      %82 = sbr.rel (0) target = $region41
    $region40: #{tpu_custom_call.1} parent=1 // pred_region
      %84 = dma.done [#allocation5], 1024
    $region41: #{tpu_custom_call.1} parent=1 // pred_fallthru
      _
    // Predicated region
    $region42: #{tpu_custom_call.1} parent=1 // pred_check
      _
    $region43: #{tpu_custom_call.1} parent=1 // pred_check_branch
      %86 = sbr.rel (0) target = $region45
    $region44: #{tpu_custom_call.1} parent=1 // pred_region
      %88 = dma.done [#allocation8], 1024
    $region45: #{tpu_custom_call.1} parent=1 // pred_fallthru
      _
    %v89 = vld [vmem:[#allocation2] sm:$0xff]
    %v90 = vld [vmem:[#allocation2 + $0x8] sm:$0xff]
    %v91 = vld [vmem:[#allocation2 + $0x10] sm:$0xff]
    %v92 = vld [vmem:[#allocation2 + $0x18] sm:$0xff]
    %v93 = vld [vmem:[#allocation2 + $0x20] sm:$0xff]
    %v94 = vld [vmem:[#allocation2 + $0x28] sm:$0xff]
    %v95 = vld [vmem:[#allocation2 + $0x30] sm:$0xff]
    %v96 = vld [vmem:[#allocation2 + $0x38] sm:$0xff]
    %v97 = vpack.c.bf16 %v91, %v89
    %v98 = vpack.c.bf16 %v92, %v90
    %v99 = vpack.c.bf16 %v95, %v93
    %v100 = vpack.c.bf16 %v96, %v94
    %v101 = vld [vmem:[#allocation4] sm:$0xf]
    %v102 = vld [vmem:[#allocation4 + $0x4] sm:$0xf]
    %v103 = vld [vmem:[#allocation4 + $0x8] sm:$0xf]
    %v104 = vld [vmem:[#allocation4 + $0xc] sm:$0xf]
    %v105 = vld [vmem:[#allocation4 + $0x10] sm:$0xf]
    %v106 = vld [vmem:[#allocation4 + $0x14] sm:$0xf]
    %v107 = vld [vmem:[#allocation4 + $0x18] sm:$0xf]
    %v108 = vld [vmem:[#allocation4 + $0x1c] sm:$0xf]
    %v109 = vld [vmem:[#allocation4 + $0x20] sm:$0xf]
    %v110 = vld [vmem:[#allocation4 + $0x24] sm:$0xf]
    %v111 = vld [vmem:[#allocation4 + $0x28] sm:$0xf]
    %v112 = vld [vmem:[#allocation4 + $0x2c] sm:$0xf]
    %v113 = vld [vmem:[#allocation4 + $0x30] sm:$0xf]
    %v114 = vld [vmem:[#allocation4 + $0x34] sm:$0xf]
    %v115 = vld [vmem:[#allocation4 + $0x38] sm:$0xf]
    %v116 = vld [vmem:[#allocation4 + $0x3c] sm:$0xf]
    %v117 = vld [vmem:[#allocation4 + $0x40] sm:$0xf]
    %v118 = vld [vmem:[#allocation4 + $0x44] sm:$0xf]
    %v119 = vld [vmem:[#allocation4 + $0x48] sm:$0xf]
    %v120 = vld [vmem:[#allocation4 + $0x4c] sm:$0xf]
    %v121 = vld [vmem:[#allocation4 + $0x50] sm:$0xf]
    %v122 = vld [vmem:[#allocation4 + $0x54] sm:$0xf]
    %v123 = vld [vmem:[#allocation4 + $0x58] sm:$0xf]
    %v124 = vld [vmem:[#allocation4 + $0x5c] sm:$0xf]
    %v125 = vld [vmem:[#allocation4 + $0x60] sm:$0xf]
    %v126 = vld [vmem:[#allocation4 + $0x64] sm:$0xf]
    %v127 = vld [vmem:[#allocation4 + $0x68] sm:$0xf]
    %v128 = vld [vmem:[#allocation4 + $0x6c] sm:$0xf]
    %v129 = vld [vmem:[#allocation4 + $0x70] sm:$0xf]
    %v130 = vld [vmem:[#allocation4 + $0x74] sm:$0xf]
    %v131 = vld [vmem:[#allocation4 + $0x78] sm:$0xf]
    %v132 = vld [vmem:[#allocation4 + $0x7c] sm:$0xf]
    %v133 = vld [vmem:[%s2] sm:$0x1]
    %v135 = vperm.slane %v133, 0
    %v169 = vunpack.c.l.b16 %v101
    %v170 = vunpack.c.l.b16 %v102
    %v171 = vunpack.c.l.b16 %v103
    %v172 = vunpack.c.l.b16 %v104
    %v173 = vunpack.c.l.b16 %v105
    %v174 = vunpack.c.l.b16 %v106
    %v175 = vunpack.c.l.b16 %v107
    %v176 = vunpack.c.l.b16 %v108
    %v177 = vunpack.c.l.b16 %v109
    %v178 = vunpack.c.l.b16 %v110
    %v179 = vunpack.c.l.b16 %v111
    %v180 = vunpack.c.l.b16 %v112
    %v181 = vunpack.c.l.b16 %v113
    %v182 = vunpack.c.l.b16 %v114
    %v183 = vunpack.c.l.b16 %v115
    %v184 = vunpack.c.l.b16 %v116
    %v185 = vunpack.c.l.b16 %v117
    %v186 = vunpack.c.l.b16 %v118
    %v187 = vunpack.c.l.b16 %v119
    %v188 = vunpack.c.l.b16 %v120
    %v189 = vunpack.c.l.b16 %v121
    %v190 = vunpack.c.l.b16 %v122
    %v191 = vunpack.c.l.b16 %v123
    %v192 = vunpack.c.l.b16 %v124
    %v193 = vunpack.c.l.b16 %v125
    %v194 = vunpack.c.l.b16 %v126
    %v195 = vunpack.c.l.b16 %v127
    %v196 = vunpack.c.l.b16 %v128
    %v197 = vunpack.c.l.b16 %v129
    %v198 = vunpack.c.l.b16 %v130
    %v199 = vunpack.c.l.b16 %v131
    %v200 = vunpack.c.l.b16 %v132
    %v201 = vpack.c.b16 %v170, %v169
    %v202 = vpack.c.b16 %v172, %v171
    %v203 = vpack.c.b16 %v174, %v173
    %v204 = vpack.c.b16 %v176, %v175
    %v205 = vpack.c.b16 %v178, %v177
    %v206 = vpack.c.b16 %v180, %v179
    %v207 = vpack.c.b16 %v182, %v181
    %v208 = vpack.c.b16 %v184, %v183
    %v209 = vpack.c.b16 %v186, %v185
    %v210 = vpack.c.b16 %v188, %v187
    %v211 = vpack.c.b16 %v190, %v189
    %v212 = vpack.c.b16 %v192, %v191
    %v213 = vpack.c.b16 %v194, %v193
    %v214 = vpack.c.b16 %v196, %v195
    %v215 = vpack.c.b16 %v198, %v197
    %v216 = vpack.c.b16 %v200, %v199
    %233 = vmatpush.bf16.msra.mxu0 %v208
    %234 = vmatpush.bf16.msra.mxu0 %v207
    %235 = vmatpush.bf16.msra.mxu0 %v206
    %236 = vmatpush.bf16.msra.mxu0 %v205
    %237 = vmatpush.bf16.msra.mxu0 %v204
    %238 = vmatpush.bf16.msra.mxu0 %v203
    %239 = vmatpush.bf16.msra.mxu0 %v202
    %240 = vmatpush.bf16.msra.mxu0 %v201
    %241 = vmatmul.bf16.gmra.mxu0 %v97
    %v242 = vpop.f32.mrf.mxu0
    %v243 = vadd.f32 %v135, %v242
    %v244 = vpop.f32.mrf.mxu0
    %v245 = vadd.f32 %v135, %v244
    %246 = vmatmul.bf16.gmra.mxu0 %v99
    %v247 = vpop.f32.mrf.mxu0
    %v248 = vadd.f32 %v135, %v247
    %v249 = vpop.f32.mrf.mxu0
    %v250 = vadd.f32 %v135, %v249
    %251 = vdwg.mxu0
    %252 = vmatpush.bf16.msra.mxu0 %v216
    %253 = vmatpush.bf16.msra.mxu0 %v215
    %254 = vmatpush.bf16.msra.mxu0 %v214
    %255 = vmatpush.bf16.msra.mxu0 %v213
    %256 = vmatpush.bf16.msra.mxu0 %v212
    %257 = vmatpush.bf16.msra.mxu0 %v211
    %258 = vmatpush.bf16.msra.mxu0 %v210
    %259 = vmatpush.bf16.msra.mxu0 %v209
    %260 = vmatmul.bf16.gmra.mxu0 %v98
    %v261 = vpop.f32.mrf.mxu0
    %v262 = vadd.f32 %v243, %v261
    %v263 = vpop.f32.mrf.mxu0
    %v264 = vadd.f32 %v245, %v263
    %265 = vmatmul.bf16.gmra.mxu0 %v100
    %v266 = vpop.f32.mrf.mxu0
    %v267 = vadd.f32 %v248, %v266
    %v268 = vpop.f32.mrf.mxu0
    %v269 = vadd.f32 %v250, %v268
    %270 = vdwg.mxu0
    %v271 = vmax.f32 %v262, 0.0
    %v272 = vmax.f32 %v264, 0.0
    %v273 = vmax.f32 %v267, 0.0
    %v274 = vmax.f32 %v269, 0.0
    %v275 = vpack.c.bf16 %v272, %v271
    %v276 = vpack.c.bf16 %v274, %v273
    %v277 = vld [vmem:[#allocation6] sm:$0xf]
    %v278 = vld [vmem:[#allocation6 + $0x4] sm:$0xf]
    %v279 = vld [vmem:[#allocation6 + $0x8] sm:$0xf]
    %v280 = vld [vmem:[#allocation6 + $0xc] sm:$0xf]
    %v281 = vld [vmem:[#allocation6 + $0x10] sm:$0xf]
    %v282 = vld [vmem:[#allocation6 + $0x14] sm:$0xf]
    %v283 = vld [vmem:[#allocation6 + $0x18] sm:$0xf]
    %v284 = vld [vmem:[#allocation6 + $0x1c] sm:$0xf]
    %v285 = vld [vmem:[#allocation6 + $0x20] sm:$0xf]
    %v286 = vld [vmem:[#allocation6 + $0x24] sm:$0xf]
    %v287 = vld [vmem:[#allocation6 + $0x28] sm:$0xf]
    %v288 = vld [vmem:[#allocation6 + $0x2c] sm:$0xf]
    %v289 = vld [vmem:[#allocation6 + $0x30] sm:$0xf]
    %v290 = vld [vmem:[#allocation6 + $0x34] sm:$0xf]
    %v291 = vld [vmem:[#allocation6 + $0x38] sm:$0xf]
    %v292 = vld [vmem:[#allocation6 + $0x3c] sm:$0xf]
    %v293 = vld [vmem:[%s4] sm:$0x1]
    %v295 = vperm.slane %v293, 0
    %v313 = vunpack.c.l.b16 %v277
    %v314 = vunpack.c.l.b16 %v278
    %v315 = vunpack.c.l.b16 %v279
    %v316 = vunpack.c.l.b16 %v280
    %v317 = vunpack.c.l.b16 %v281
    %v318 = vunpack.c.l.b16 %v282
    %v319 = vunpack.c.l.b16 %v283
    %v320 = vunpack.c.l.b16 %v284
    %v321 = vunpack.c.l.b16 %v285
    %v322 = vunpack.c.l.b16 %v286
    %v323 = vunpack.c.l.b16 %v287
    %v324 = vunpack.c.l.b16 %v288
    %v325 = vunpack.c.l.b16 %v289
    %v326 = vunpack.c.l.b16 %v290
    %v327 = vunpack.c.l.b16 %v291
    %v328 = vunpack.c.l.b16 %v292
    %v329 = vpack.c.b16 %v314, %v313
    %v330 = vpack.c.b16 %v316, %v315
    %v331 = vpack.c.b16 %v318, %v317
    %v332 = vpack.c.b16 %v320, %v319
    %v333 = vpack.c.b16 %v322, %v321
    %v334 = vpack.c.b16 %v324, %v323
    %v335 = vpack.c.b16 %v326, %v325
    %v336 = vpack.c.b16 %v328, %v327
    %345 = vmatpush.bf16.msra.mxu0 %v336
    %346 = vmatpush.bf16.msra.mxu0 %v335
    %347 = vmatpush.bf16.msra.mxu0 %v334
    %348 = vmatpush.bf16.msra.mxu0 %v333
    %349 = vmatpush.bf16.msra.mxu0 %v332
    %350 = vmatpush.bf16.msra.mxu0 %v331
    %351 = vmatpush.bf16.msra.mxu0 %v330
    %352 = vmatpush.bf16.msra.mxu0 %v329
    %353 = vmatmul.bf16.gmra.mxu0 %v275
    %v354 = vpop.f32.mrf.mxu0
    %v355 = vadd.f32 %v295, %v354
    %v356 = vpop.f32.mrf.mxu0
    %v357 = vadd.f32 %v295, %v356
    %358 = vmatmul.bf16.gmra.mxu0 %v276
    %v359 = vpop.f32.mrf.mxu0
    %v360 = vadd.f32 %v295, %v359
    %v361 = vpop.f32.mrf.mxu0
    %v362 = vadd.f32 %v295, %v361
    %363 = vdwg.mxu0
    %v364 = vmax.f32 %v355, 0.0
    %v365 = vmax.f32 %v357, 0.0
    %v366 = vmax.f32 %v360, 0.0
    %v367 = vmax.f32 %v362, 0.0
    %v368 = vpack.c.bf16 %v365, %v364
    %v369 = vpack.c.bf16 %v367, %v366
    %v370 = vld [vmem:[#allocation7] sm:$0xf]
    %v371 = vld [vmem:[#allocation7 + $0x4] sm:$0xf]
    %v372 = vld [vmem:[#allocation7 + $0x8] sm:$0xf]
    %v373 = vld [vmem:[#allocation7 + $0xc] sm:$0xf]
    %v374 = vld [vmem:[#allocation7 + $0x10] sm:$0xf]
    %v375 = vld [vmem:[#allocation7 + $0x14] sm:$0xf]
    %v376 = vld [vmem:[#allocation7 + $0x18] sm:$0xf]
    %v377 = vld [vmem:[#allocation7 + $0x1c] sm:$0xf]
    %v378 = vld [vmem:[#allocation7 + $0x20] sm:$0xf]
    %v379 = vld [vmem:[#allocation7 + $0x24] sm:$0xf]
    %v380 = vld [vmem:[#allocation7 + $0x28] sm:$0xf]
    %v381 = vld [vmem:[#allocation7 + $0x2c] sm:$0xf]
    %v382 = vld [vmem:[#allocation7 + $0x30] sm:$0xf]
    %v383 = vld [vmem:[#allocation7 + $0x34] sm:$0xf]
    %v384 = vld [vmem:[#allocation7 + $0x38] sm:$0xf]
    %v385 = vld [vmem:[#allocation7 + $0x3c] sm:$0xf]
    %v386 = vld [vmem:[%s6] sm:$0x1]
    %v388 = vperm.slane %v386, 0
    %v406 = vunpack.c.l.b16 %v370
    %v407 = vunpack.c.l.b16 %v371
    %v408 = vunpack.c.l.b16 %v372
    %v409 = vunpack.c.l.b16 %v373
    %v410 = vunpack.c.l.b16 %v374
    %v411 = vunpack.c.l.b16 %v375
    %v412 = vunpack.c.l.b16 %v376
    %v413 = vunpack.c.l.b16 %v377
    %v414 = vunpack.c.l.b16 %v378
    %v415 = vunpack.c.l.b16 %v379
    %v416 = vunpack.c.l.b16 %v380
    %v417 = vunpack.c.l.b16 %v381
    %v418 = vunpack.c.l.b16 %v382
    %v419 = vunpack.c.l.b16 %v383
    %v420 = vunpack.c.l.b16 %v384
    %v421 = vunpack.c.l.b16 %v385
    %v422 = vpack.c.b16 %v407, %v406
    %v423 = vpack.c.b16 %v409, %v408
    %v424 = vpack.c.b16 %v411, %v410
    %v425 = vpack.c.b16 %v413, %v412
    %v426 = vpack.c.b16 %v415, %v414
    %v427 = vpack.c.b16 %v417, %v416
    %v428 = vpack.c.b16 %v419, %v418
    %v429 = vpack.c.b16 %v421, %v420
    %438 = vmatpush.bf16.msra.mxu0 %v429
    %439 = vmatpush.bf16.msra.mxu0 %v428
    %440 = vmatpush.bf16.msra.mxu0 %v427
    %441 = vmatpush.bf16.msra.mxu0 %v426
    %442 = vmatpush.bf16.msra.mxu0 %v425
    %443 = vmatpush.bf16.msra.mxu0 %v424
    %444 = vmatpush.bf16.msra.mxu0 %v423
    %445 = vmatpush.bf16.msra.mxu0 %v422
    %446 = vmatmul.bf16.gmra.mxu0 %v368
    %v447 = vpop.f32.mrf.mxu0
    %v448 = vadd.f32 %v388, %v447
    %v449 = vpop.f32.mrf.mxu0
    %v450 = vadd.f32 %v388, %v449
    %451 = vmatmul.bf16.gmra.mxu0 %v369
    %v452 = vpop.f32.mrf.mxu0
    %v453 = vadd.f32 %v388, %v452
    %v454 = vpop.f32.mrf.mxu0
    %v455 = vadd.f32 %v388, %v454
    %456 = vdwg.mxu0
    %vm457 = vcmask 15360
    %458 = vst.msk [vmem:[%s7] sm:$0xff] %vm457, %v448
    %459 = vst.msk [vmem:[%s7 + $0x8] sm:$0xff] %vm457, %v450
    %460 = vst.msk [vmem:[%s7 + $0x10] sm:$0xff] %vm457, %v453
    %461 = vst.msk [vmem:[%s7 + $0x18] sm:$0xff] %vm457, %v455
    // Predicated region
    $region46: #{tpu_custom_call.1} parent=1 // pred_check
      _
    $region47: #{tpu_custom_call.1} parent=1 // pred_check_branch
      %463 = sbr.rel (0) target = $region49
    $region48: #{tpu_custom_call.1} parent=1 // pred_region
      _
    $region49: #{tpu_custom_call.1} parent=1 // pred_fallthru
      _
    // Predicated region
    $region50: #{tpu_custom_call.1} parent=1 // pred_check
      _
    $region51: #{tpu_custom_call.1} parent=1 // pred_check_branch
      %465 = sbr.rel (0) target = $region53
    $region52: #{tpu_custom_call.1} parent=1 // pred_region
      _
    $region53: #{tpu_custom_call.1} parent=1 // pred_fallthru
      _
    %466 = vsyncpa [#allocation3], 1
    %467 = vsyncpa [#allocation5], 1
    %468 = vsyncpa [#allocation8], 1

</llo_original>
